<compile_context>
chip_gen: v6e
topology: v6e:2x2x1
jax: 0.10.0
libtpu: 0.0.40
codegen_flags: <defaults>
</compile_context>

<pallas_src>
import math

import jax
import jax.numpy as jnp
from jax.experimental import pallas as pl
from jax.experimental.pallas import tpu as pltpu


def _fpn_combine_kernel(w_ref, x0_ref, x1_ref, x2_ref, o_ref):
    # w_ref: (3,) normalized (already softmaxed) weights in SMEM (f32 scalar prefetch).
    w0 = w_ref[0]
    w1 = w_ref[1]
    w2 = w_ref[2]
    acc = (x0_ref[...].astype(jnp.float32) * w0
           + x1_ref[...].astype(jnp.float32) * w1
           + x2_ref[...].astype(jnp.float32) * w2)
    o_ref[...] = acc.astype(o_ref.dtype)


_LANE_CANDIDATES = (16384, 8192, 4096, 2048, 1024, 512, 256, 128)


def _vmem_capacity_bytes():
    """Physical VMEM per TensorCore; conservative (v7x) fallback if unknown."""
    try:
        info = pltpu.get_tpu_info()
        cap = getattr(info, "vmem_capacity_bytes", None)
        if cap:
            return int(cap)
    except Exception:
        pass
    return 64 << 20


def _choose_lanes(total):
    """Widest lane dim (multiple of 128) that exactly divides the element count."""
    for cand in _LANE_CANDIDATES:
        if total % cand == 0:
            return cand
    return None


def _pick_block_rows(rows, lanes, itemsize, min_sub, target_bytes, min_steps=2):
    """Row tile: multiple of the sublane minimum, ~target_bytes per block.

    No divisibility requirement on `rows` (the grid uses cdiv with a masked
    partial last block).  Keeps >= min_steps grid steps when feasible so the
    parallel grid axis can be sharded across v7x's two TensorCores.
    """
    if rows <= min_sub:
        return rows  # block row dim == full array dim (always legal)
    br = max(min_sub, (target_bytes // (lanes * itemsize)) // min_sub * min_sub)
    br = min(br, (rows // min_sub) * min_sub)
    while br > min_sub and (rows + br - 1) // br < min_steps:
        br = max(min_sub, (br // 2) // min_sub * min_sub)
    return br


def fpn_combine_attn(xs, edge_weights):
    """xs: list of 3 same-shape/dtype NCHW arrays.
    edge_weights: (3,) raw parameter; softmax applied here (wrapper-side)."""
    assert len(xs) == 3
    shape = xs[0].shape
    dtype = xs[0].dtype
    for x in xs:
        assert x.shape == shape and x.dtype == dtype

    # Softmax of 3 scalars hoisted out of the kernel.  Computed in the input
    # dtype to match torch.softmax(edge_weights.to(dtype), dim=0), then kept
    # as f32 for the in-kernel f32 accumulation.
    nw = jax.nn.softmax(edge_weights.astype(dtype)).astype(jnp.float32)

    total = math.prod(shape)
    itemsize = jnp.dtype(dtype).itemsize
    min_sub = {1: 32, 2: 16}.get(itemsize, 8)  # sublane minimum per packed dtype

    vmem_cap = _vmem_capacity_bytes()
    # ~4 MiB blocks on 128 MiB-VMEM chips (v5e/v6e); ~2 MiB on v7x (64 MiB/TC).
    target_bytes = (4 << 20) if vmem_cap >= (100 << 20) else (2 << 20)

    lanes = _choose_lanes(total)
    if lanes is not None:
        # Lane-dense (rows, lanes) slab; ragged row tail handled by cdiv grid.
        rows = total // lanes
        br = _pick_block_rows(rows, lanes, itemsize, min_sub, target_bytes)
        grid = (pl.cdiv(rows, br),)
        blk = pl.BlockSpec((br, lanes), lambda i, w: (i, 0))
        flat_shape = (rows, lanes)
        block_bytes = br * lanes * itemsize
    else:
        # Element count not a multiple of 128: single-row slab tiled along the
        # lane axis.  The ragged tail is a masked partial block -- no input
        # padding or output slicing (no extra HBM traffic) is ever emitted.
        bl = max(128, (target_bytes // itemsize) // 128 * 128)
        while bl > 128 and pl.cdiv(total, bl) < 2:
            bl = max(128, (bl // 2) // 128 * 128)
        grid = (pl.cdiv(total, bl),)
        blk = pl.BlockSpec((1, bl), lambda i, w: (0, i))
        flat_shape = (1, total)
        block_bytes = bl * itemsize

    flat = [x.reshape(flat_shape) for x in xs]

    # 4 streams x 2 pipeline buffers per block plus headroom, clamped to ~80%
    # of the chip's physical VMEM (never exceeds v7x's 64 MiB).
    vmem_limit = int(min(int(0.8 * vmem_cap), max(32 << 20, 12 * block_bytes)))

    out = pl.pallas_call(
        _fpn_combine_kernel,
        out_shape=jax.ShapeDtypeStruct(flat_shape, dtype),
        grid_spec=pltpu.PrefetchScalarGridSpec(
            num_scalar_prefetch=1,
            grid=grid,
            in_specs=[blk, blk, blk],
            out_specs=blk,
        ),
        compiler_params=pltpu.CompilerParams(
            dimension_semantics=("parallel",),
            vmem_limit_bytes=vmem_limit,
        ),
    )(nw, *flat)

    return out.reshape(shape)


if __name__ == "__main__":
    key = jax.random.PRNGKey(0)
    k0, k1, k2 = jax.random.split(key, 3)

    # Small NCHW inputs consistent with the module's forward (3 FPN nodes).
    B, C, H, W = 2, 4, 16, 16
    x0 = jax.random.normal(k0, (B, C, H, W), dtype=jnp.float32)
    x1 = jax.random.normal(k1, (B, C, H, W), dtype=jnp.float32)
    x2 = jax.random.normal(k2, (B, C, H, W), dtype=jnp.float32)

    # Deterministic parameter init: nn.Parameter(torch.ones(3)) plus a small
    # deterministic perturbation so the softmax weights are non-trivial.
    edge_weights = jnp.ones((3,), dtype=jnp.float32) + jnp.array(
        [0.1, -0.2, 0.3], dtype=jnp.float32)

    out = jax.block_until_ready(fpn_combine_attn([x0, x1, x2], edge_weights))

    # Reference check (plain JAX, same math as the PyTorch forward).
    nw_ref = jax.nn.softmax(edge_weights)
    ref = x0 * nw_ref[0] + x1 * nw_ref[1] + x2 * nw_ref[2]
    assert out.shape == (B, C, H, W)
    assert jnp.allclose(out, ref, atol=1e-5, rtol=1e-5)

    print("KERNEL_OK")
</pallas_src>

<mosaic_0001>
module attributes {stable_mosaic.version = 11 : i64} {
  func.func @_fpn_combine_kernel(%arg0: i32, %arg1: memref<3xf32, #tpu.memory_space<smem>>, %arg2: memref<1x2048xf32, #tpu.memory_space<vmem>>, %arg3: memref<1x2048xf32, #tpu.memory_space<vmem>>, %arg4: memref<1x2048xf32, #tpu.memory_space<vmem>>, %arg5: memref<1x2048xf32, #tpu.memory_space<vmem>>) attributes {dimension_semantics = [#tpu.dimension_semantics<parallel>], iteration_bounds = array<i64: 1>, scalar_prefetch = 1 : i64, scratch_operands = 0 : i64, tpu.core_type = #tpu.core_type<tc>, window_params = [{transform_indices = @transform_0, window_bounds = array<i64: 1, 2048>}, {transform_indices = @transform_1, window_bounds = array<i64: 1, 2048>}, {transform_indices = @transform_2, window_bounds = array<i64: 1, 2048>}, {transform_indices = @transform_3, window_bounds = array<i64: 1, 2048>}]} {
    %c0 = arith.constant 0 : index
    %0 = memref.load %arg1[%c0] : memref<3xf32, #tpu.memory_space<smem>>
    %c1 = arith.constant 1 : index
    %1 = memref.load %arg1[%c1] : memref<3xf32, #tpu.memory_space<smem>>
    %c2 = arith.constant 2 : index
    %2 = memref.load %arg1[%c2] : memref<3xf32, #tpu.memory_space<smem>>
    %c0_0 = arith.constant 0 : index
    %c0_1 = arith.constant 0 : index
    %3 = vector.load %arg2[%c0_0, %c0_1] : memref<1x2048xf32, #tpu.memory_space<vmem>>, vector<1x2048xf32>
    %4 = vector.broadcast %0 : f32 to vector<1x2048xf32>
    %5 = arith.mulf %3, %4 : vector<1x2048xf32>
    %c0_2 = arith.constant 0 : index
    %c0_3 = arith.constant 0 : index
    %6 = vector.load %arg3[%c0_2, %c0_3] : memref<1x2048xf32, #tpu.memory_space<vmem>>, vector<1x2048xf32>
    %7 = vector.broadcast %1 : f32 to vector<1x2048xf32>
    %8 = arith.mulf %6, %7 : vector<1x2048xf32>
    %9 = arith.addf %5, %8 : vector<1x2048xf32>
    %c0_4 = arith.constant 0 : index
    %c0_5 = arith.constant 0 : index
    %10 = vector.load %arg4[%c0_4, %c0_5] : memref<1x2048xf32, #tpu.memory_space<vmem>>, vector<1x2048xf32>
    %11 = vector.broadcast %2 : f32 to vector<1x2048xf32>
    %12 = arith.mulf %10, %11 : vector<1x2048xf32>
    %13 = arith.addf %9, %12 : vector<1x2048xf32>
    %c0_6 = arith.constant 0 : index
    %c0_7 = arith.constant 0 : index
    %14 = vector.load %arg5[%c0_6, %c0_7] : memref<1x2048xf32, #tpu.memory_space<vmem>>, vector<1x2048xf32>
    tpu.vector_store %arg5[%c0_6, %c0_7], %13 {strides = array<i32>} : memref<1x2048xf32, #tpu.memory_space<vmem>>, vector<1x2048xf32>,
    return
  }
  func.func @transform_0(%arg0: i32, %arg1: memref<3xf32, #tpu.memory_space<smem>>) -> (i32, i32) {
    %c0_i32 = arith.constant 0 : i32
    %c0_i32_0 = arith.constant 0 : i32
    return %arg0, %c0_i32 : i32, i32
  }
  func.func @transform_1(%arg0: i32, %arg1: memref<3xf32, #tpu.memory_space<smem>>) -> (i32, i32) {
    %c0_i32 = arith.constant 0 : i32
    %c0_i32_0 = arith.constant 0 : i32
    return %arg0, %c0_i32 : i32, i32
  }
  func.func @transform_2(%arg0: i32, %arg1: memref<3xf32, #tpu.memory_space<smem>>) -> (i32, i32) {
    %c0_i32 = arith.constant 0 : i32
    %c0_i32_0 = arith.constant 0 : i32
    return %arg0, %c0_i32 : i32, i32
  }
  func.func @transform_3(%arg0: i32, %arg1: memref<3xf32, #tpu.memory_space<smem>>) -> (i32, i32) {
    %c0_i32 = arith.constant 0 : i32
    %c0_i32_0 = arith.constant 0 : i32
    return %arg0, %c0_i32 : i32, i32
  }
}

</mosaic_0001>

<llo_original>
// kernel: tpu_custom_call.1
$region0: #{tpu_custom_call.1}
  #allocation0 [shape = 'u32[]', space=smem, size = 0x4, offset = 0x4, fixed_abs, tag = 'smem constant byte address 0x4 - core index']
  #allocation1 [shape = 'u32[144,128]{1,0:T(1,128)}', space=vmem, size = 0x12000, scoped, tag = 'internal scratch']
  #allocation2 [shape = 's32[1]{0}', space=sflag, size = 0x4, scoped, tag = 'scoped memory for tpu_custom_call.1']
  #allocation3 [shape = 'u8[512]{0}', space=smem, size = 0x200, scoped, tag = 'prefetched SMEM operand 0']
  %s0 = inlined_call_operand.hbm [shape: f32[3], index: 0, kind: input, shape index: {}]
  %s1 = inlined_call_operand.hbm [shape: f32[1,2048], index: 1, kind: input, shape index: {}]
  %s2 = inlined_call_operand.hbm [shape: f32[1,2048], index: 2, kind: input, shape index: {}]
  %s3 = inlined_call_operand.hbm [shape: f32[1,2048], index: 3, kind: input, shape index: {}]
  %s4 = inlined_call_operand.hbm [shape: f32[1,2048], index: 4, kind: output, shape index: {}]
  %s5 = sld [smem:[#allocation0]]
  $region34: #{tpu_custom_call.1} parent=0
    _
  %s7 = ssub.s32 1, %s5
  %s8 = scalar_select 0, %s7, %s5
  %10 = dma.hbm_to_smem %s0, 16, [#allocation3], [#allocation2]
  %11 = dma.done [#allocation2], 16
  %12 = sfence
  $region1: #{tpu_custom_call.1} parent=0
    #allocation4 [shape = 'u8[8192]{0}', space=vmem, size = 0x2000, scoped, tag = 'input window, operand 1, single buffered']
    #allocation5 [shape = 's32[1]{0}', space=sflag, size = 0x4, scoped, tag = 'scoped memory for tpu_custom_call.1']
    #allocation6 [shape = 's32[1]{0}', space=sflag, size = 0x4, scoped, tag = 'scoped memory for tpu_custom_call.1']
    #allocation7 [shape = 'u8[8192]{0}', space=vmem, size = 0x2000, scoped, tag = 'input window, operand 2, single buffered']
    #allocation8 [shape = 's32[1]{0}', space=sflag, size = 0x4, scoped, tag = 'scoped memory for tpu_custom_call.1']
    #allocation9 [shape = 'u8[8192]{0}', space=vmem, size = 0x2000, scoped, tag = 'input window, operand 3, single buffered']
    #allocation10 [shape = 'u8[8192]{0}', space=vmem, size = 0x2000, scoped, tag = 'output window, operand 0, single buffered']
    %13 = vsyncpa [#allocation5], 0
    %14 = vsyncpa [#allocation8], 0
    %15 = vsyncpa [#allocation6], 0
    // Predicated region
    $region2: #{tpu_custom_call.1} parent=1 // pred_check
      _
    $region3: #{tpu_custom_call.1} parent=1 // pred_check_branch
      %17 = sbr.rel (0) target = $region5
    $region4: #{tpu_custom_call.1} parent=1 // pred_region
      %s19 = ssub.s32 256, 256
      %20 = vsyncadd [#allocation5], %s19
      %s22 = sshll.u32 [#allocation4], 4
      %s23 = int_to_ptr.vmem [resolvable:$true] %s22
      %25 = dma.hbm_to_vmem [thread:$0]  %s1, 256, %s23, [#allocation5]
    $region5: #{tpu_custom_call.1} parent=1 // pred_fallthru
      _
    // Predicated region
    $region6: #{tpu_custom_call.1} parent=1 // pred_check
      _
    $region7: #{tpu_custom_call.1} parent=1 // pred_check_branch
      %27 = sbr.rel (0) target = $region9
    $region8: #{tpu_custom_call.1} parent=1 // pred_region
      %s29 = ssub.s32 256, 256
      %30 = vsyncadd [#allocation8], %s29
      %s32 = sshll.u32 [#allocation7], 4
      %s33 = int_to_ptr.vmem [resolvable:$true] %s32
      %35 = dma.hbm_to_vmem [thread:$0]  %s2, 256, %s33, [#allocation8]
    $region9: #{tpu_custom_call.1} parent=1 // pred_fallthru
      _
    // Predicated region
    $region10: #{tpu_custom_call.1} parent=1 // pred_check
      _
    $region11: #{tpu_custom_call.1} parent=1 // pred_check_branch
      %37 = sbr.rel (0) target = $region13
    $region12: #{tpu_custom_call.1} parent=1 // pred_region
      %s39 = ssub.s32 256, 256
      %40 = vsyncadd [#allocation8], %s39
      %s42 = sshll.u32 [#allocation9], 4
      %s43 = int_to_ptr.vmem [resolvable:$true] %s42
      %45 = dma.hbm_to_vmem [thread:$0]  %s3, 256, %s43, [#allocation8]
    $region13: #{tpu_custom_call.1} parent=1 // pred_fallthru
      _
    // Predicated region
    $region14: #{tpu_custom_call.1} parent=1 // pred_check
      _
    $region15: #{tpu_custom_call.1} parent=1 // pred_check_branch
      %47 = sbr.rel (0) target = $region17
    $region16: #{tpu_custom_call.1} parent=1 // pred_region
      %48 = dma.done [#allocation5], 256
    $region17: #{tpu_custom_call.1} parent=1 // pred_fallthru
      _
    // Predicated region
    $region18: #{tpu_custom_call.1} parent=1 // pred_check
      _
    $region19: #{tpu_custom_call.1} parent=1 // pred_check_branch
      %50 = sbr.rel (0) target = $region21
    $region20: #{tpu_custom_call.1} parent=1 // pred_region
      %51 = dma.done [#allocation8], 256
    $region21: #{tpu_custom_call.1} parent=1 // pred_fallthru
      _
    // Predicated region
    $region22: #{tpu_custom_call.1} parent=1 // pred_check
      _
    $region23: #{tpu_custom_call.1} parent=1 // pred_check_branch
      %53 = sbr.rel (0) target = $region25
    $region24: #{tpu_custom_call.1} parent=1 // pred_region
      %54 = dma.done [#allocation8], 256
    $region25: #{tpu_custom_call.1} parent=1 // pred_fallthru
      _
    %s55 = sld [smem:[#allocation3]]
    %s56 = sld [smem:[#allocation3 + $0x1]]
    %s57 = sld [smem:[#allocation3 + $0x2]]
    %v58 = vld [vmem:[#allocation4] sm:$0xff]
    %v59 = vld [vmem:[#allocation4 + $0x8] sm:$0xff]
    %v60 = vstv %s55
    %v61 = vmul.f32 %v58, %v60
    %v62 = vmul.f32 %v59, %v60
    %v63 = vld [vmem:[#allocation7] sm:$0xff]
    %v64 = vld [vmem:[#allocation7 + $0x8] sm:$0xff]
    %v65 = vstv %s56
    %v66 = vmul.f32 %v63, %v65
    %v67 = vmul.f32 %v64, %v65
    %v68 = vadd.f32 %v61, %v66
    %v69 = vadd.f32 %v62, %v67
    %v70 = vld [vmem:[#allocation9] sm:$0xff]
    %v71 = vld [vmem:[#allocation9 + $0x8] sm:$0xff]
    %v72 = vstv %s57
    %v73 = vmul.f32 %v70, %v72
    %v74 = vmul.f32 %v71, %v72
    %v75 = vadd.f32 %v68, %v73
    %v76 = vadd.f32 %v69, %v74
    %77 = vst [vmem:[#allocation10] sm:$0xff] %v75
    %78 = vst [vmem:[#allocation10 + $0x8] sm:$0xff] %v76
    // Predicated region
    $region26: #{tpu_custom_call.1} parent=1 // pred_check
      _
    $region27: #{tpu_custom_call.1} parent=1 // pred_check_branch
      %80 = sbr.rel (0) target = $region29
    $region28: #{tpu_custom_call.1} parent=1 // pred_region
      %s82 = ssub.s32 256, 256
      %83 = vsyncadd [#allocation6], %s82
      %s85 = sshll.u32 [#allocation10], 4
      %s86 = int_to_ptr.vmem [resolvable:$true] %s85
      %88 = dma.vmem_to_hbm [thread:$0]  %s86, 256, %s4, [#allocation6]
    $region29: #{tpu_custom_call.1} parent=1 // pred_fallthru
      _
    // Predicated region
    $region30: #{tpu_custom_call.1} parent=1 // pred_check
      _
    $region31: #{tpu_custom_call.1} parent=1 // pred_check_branch
      %90 = sbr.rel (0) target = $region33
    $region32: #{tpu_custom_call.1} parent=1 // pred_region
      %91 = dma.done [#allocation6], 256
    $region33: #{tpu_custom_call.1} parent=1 // pred_fallthru
      _
    %92 = vsyncpa [#allocation5], 1
    %93 = vsyncpa [#allocation8], 1
    %94 = vsyncpa [#allocation6], 1

</llo_original>
